<compile_context>
chip_gen: v6e
topology: v6e:2x2x1
jax: 0.10.0
libtpu: 0.0.40
codegen_flags: <defaults>
</compile_context>

<pallas_src>
import numpy as np
import jax
import jax.numpy as jnp
from jax import lax
from jax.experimental import pallas as pl
from jax.experimental.pallas import tpu as pltpu

EPS = 1e-5
LANE = 128      # lane width: channel dims are padded to multiples of this


def _round_up(x, m):
    return ((x + m - 1) // m) * m


def _bf16(x):
    """Round to bf16 and back to f32 (reference-path operand rounding)."""
    return x.astype(jnp.bfloat16).astype(jnp.float32)


# ------------------------------------------------------------------ kernels

def _matmul_bias_relu_kernel(x_ref, w_ref, b_ref, o_ref):
    # x_ref: (Mp, Kp) bf16, w_ref: (Kp, Np) bf16 (BN scale folded), b_ref: (1, Np) f32
    y = jnp.dot(x_ref[...], w_ref[...], preferred_element_type=jnp.float32)
    o_ref[...] = jnp.maximum(y + b_ref[...], 0.0).astype(o_ref.dtype)


def matmul_bias_relu(x_bf16, w_bf16, bias_row_f32):
    """Fused (all four pyramid stages) 1x1-conv + folded-BN bias + ReLU.

    The caller pads M to a multiple of 8 (unmasked sublane stores); the output is
    bf16 since it only feeds the bilinear upsample.
    """
    m = x_bf16.shape[0]
    ncols = w_bf16.shape[1]
    return pl.pallas_call(
        _matmul_bias_relu_kernel,
        out_shape=jax.ShapeDtypeStruct((m, ncols), jnp.bfloat16),
        in_specs=[pl.BlockSpec(memory_space=pltpu.MemorySpace.VMEM)] * 3,
        out_specs=pl.BlockSpec(memory_space=pltpu.MemorySpace.VMEM),
    )(x_bf16, w_bf16, bias_row_f32)


def _conv3x3_bias_relu_kernel(x_ref, w_ref, b_ref, o_ref, acc_ref):
    # x_ref  : (TR+2, Wp2, TCIN)   bf16  spatially padded row tile (1-row halo each side)
    # w_ref  : (3, 3, TCIN, Coutp) bf16  (BN scale pre-folded into the weights)
    # b_ref  : (1, Coutp)          f32   folded BN bias
    # o_ref  : (TR, W, Coutp)      bf16
    # acc_ref: (TR, W, Coutp)      f32   scratch accumulator (lives across the Cin axis)
    c = pl.program_id(2)

    @pl.when(c == 0)
    def _():
        acc_ref[...] = jnp.zeros_like(acc_ref)

    tr, w_out, coutp = o_ref.shape
    wp2 = x_ref.shape[1]
    tcin = x_ref.shape[2]

    for ky in range(3):
        # Leading-axis slice + layout-preserving flatten (wp2 % 8 == 0 and
        # tcin % 128 == 0), so the MXU operand needs no relayout copy.
        xr = x_ref[ky:ky + tr, :, :].reshape(tr * wp2, tcin)
        part = None
        for kx in range(3):
            y = jnp.dot(xr, w_ref[ky, kx, :, :],
                        preferred_element_type=jnp.float32)
            # shift-after-matmul: apply the kx tap offset on the small output
            y = y.reshape(tr, wp2, coutp)[:, kx:kx + w_out, :]
            part = y if part is None else part + y
        # per-ky accumulate into the scratch: at most one full matmul result plus
        # one partial sum is live at a time (keeps vreg/VMEM spill pressure down).
        acc_ref[...] += part

    @pl.when(c == pl.num_programs(2) - 1)
    def _():
        o_ref[...] = jnp.maximum(acc_ref[...] + b_ref[...], 0.0).astype(o_ref.dtype)


def conv3x3_bias_relu(x_nhwc, w_hwio, bias):
    """3x3 conv (pad=1, no conv bias) + per-channel bias + ReLU.

    x_nhwc: (N,H,W,Cin) float; w_hwio: (3,3,Cin,Cout) f32 with the BN scale already
    folded in; bias: (Cout,) f32.  Returns (N,H,W,Coutp) bf16 with Cout padded to a
    multiple of 128; the caller slices [..., :Cout].
    """
    n, h, w, cin = x_nhwc.shape
    cout = w_hwio.shape[-1]
    cinp = _round_up(cin, LANE)
    # K tile: 256 fills the 256-wide MXU on v6e/v7x and halves the weight DMA
    # count; fall back to 128 (v5e-native, still correct everywhere) when Cin
    # does not tile evenly by 256.
    tcin = 256 if cinp % 256 == 0 else 128
    coutp = _round_up(cout, LANE)

    # Row tiling: pad H up to a sublane multiple (extra zero rows sliced off after
    # the kernel) instead of collapsing to a single full-height tile.
    hp = _round_up(h, 8)
    tr = 16 if hp % 16 == 0 else 8
    nrt = hp // tr
    wp2 = _round_up(w + 2, 8)             # padded width (halo + align to sublanes)

    # bf16 BEFORE pad/stack: halves the wrapper-side HBM traffic of the halo
    # materialization.
    x_bf = x_nhwc.astype(jnp.bfloat16)
    # One pad op: +1 halo top, bottom halo + H alignment, +1 halo left,
    # right halo + width alignment, channel pad.
    xp = jnp.pad(x_bf, ((0, 0), (1, 1 + hp - h), (1, wp2 - (w + 1)),
                        (0, cinp - cin)))
    # Overlapping (tr+2)-row windows for the vertical halo (non-overlapping
    # BlockSpecs over the stacked array).
    # TODO(synk): replace this stack with a memory_space=pl.ANY input + manual
    # make_async_copy double-buffering (overlapping row windows DMA'd in-kernel)
    # to remove this extra HBM pass / per-tile row duplication at production sizes.
    x_tiles = jnp.stack([xp[:, r * tr:r * tr + tr + 2] for r in range(nrt)],
                        axis=1)                                   # (N, nrt, tr+2, wp2, cinp) bf16
    wq = jnp.pad(w_hwio, ((0, 0), (0, 0), (0, cinp - cin),
                          (0, coutp - cout))).astype(jnp.bfloat16)
    bq = jnp.pad(bias, (0, coutp - cout)).reshape(1, coutp).astype(jnp.float32)

    ncin = cinp // tcin

    # Scoped-VMEM budget: double-buffered x/w/out tiles + f32 acc + live matmul
    # temps.  Capped at 48 MiB so it stays inside v7x's 64 MiB physical VMEM.
    est = (2 * ((tr + 2) * wp2 * tcin * 2 + 9 * tcin * coutp * 2
                + tr * w * coutp * 2)
           + tr * w * coutp * 4 + 2 * tr * wp2 * coutp * 4)
    vmem_limit = int(min(48 << 20, max(32 << 20, 2 * est)))

    # NOTE: the Cin axis is the innermost (reduction) axis, so the weight tile is
    # streamed per step; tr=16 + tcin=256 keep it double-buffered and raise the
    # flops per weight byte 4x vs the previous tr=8/tcin=128 config.
    # TODO(synk): on v6e/v5e (128 MiB VMEM) a fully VMEM-resident weight variant
    # (no Cin grid axis, in-kernel fori_loop over K slices) removes weight
    # re-fetches entirely; not emitted here to keep one generation-agnostic kernel.
    out = pl.pallas_call(
        _conv3x3_bias_relu_kernel,
        out_shape=jax.ShapeDtypeStruct((n, hp, w, coutp), jnp.bfloat16),
        grid=(n, nrt, ncin),
        in_specs=[
            pl.BlockSpec((None, None, tr + 2, wp2, tcin),
                         lambda b, r, c: (b, r, 0, 0, c)),
            pl.BlockSpec((3, 3, tcin, coutp), lambda b, r, c: (0, 0, c, 0)),
            pl.BlockSpec((1, coutp), lambda b, r, c: (0, 0)),
        ],
        out_specs=pl.BlockSpec((None, tr, w, coutp), lambda b, r, c: (b, r, 0, 0)),
        scratch_shapes=[pltpu.VMEM((tr, w, coutp), jnp.float32)],
        compiler_params=pltpu.CompilerParams(
            dimension_semantics=("parallel", "parallel", "arbitrary"),
            vmem_limit_bytes=vmem_limit),
    )(x_tiles, wq, bq)
    return out[:, :h]   # drop the H-alignment rows; caller slices channels


# ------------------------------------------------------------------ JAX glue

def adaptive_pool_matrix(in_size, out_size):
    """Row-stochastic matrix P (out,in) reproducing nn.AdaptiveAvgPool2d bins."""
    P = np.zeros((out_size, in_size), np.float32)
    for i in range(out_size):
        start = (i * in_size) // out_size
        end = ((i + 1) * in_size + out_size - 1) // out_size
        P[i, start:end] = 1.0 / float(end - start)
    return jnp.asarray(P)


def bilinear_up_matrix(out_size, in_size):
    """Interpolation matrix A (out,in) for bilinear, align_corners=True."""
    A = np.zeros((out_size, in_size), np.float32)
    if in_size == 1:
        A[:, 0] = 1.0
        return jnp.asarray(A)
    scale = (in_size - 1) / (out_size - 1) if out_size > 1 else 0.0
    for i in range(out_size):
        src = i * scale
        i0 = min(int(np.floor(src)), in_size - 1)
        frac = src - i0
        A[i, i0] += 1.0 - frac
        if i0 + 1 < in_size:
            A[i, i0 + 1] += frac
    return jnp.asarray(A)


def fold_bn(gamma, beta, mean, var, eps=EPS):
    scale = gamma / jnp.sqrt(var + eps)
    bias = beta - mean * scale
    return scale, bias


def init_params(key, features, out_features, sizes):
    """Deterministic synthetic params mirroring the PyTorch module's shapes."""
    params = {"stages": []}
    for _ in sizes:
        key, k1, k2, k3, k4, k5 = jax.random.split(key, 6)
        params["stages"].append({
            # PyTorch 1x1 conv weight is (OutF, C, 1, 1); stored here as (C, OutF)
            "w": 0.1 * jax.random.normal(k1, (features, out_features), jnp.float32),
            "gamma": 1.0 + 0.1 * jax.random.normal(k2, (out_features,), jnp.float32),
            "beta": 0.1 * jax.random.normal(k3, (out_features,), jnp.float32),
            "mean": 0.1 * jax.random.normal(k4, (out_features,), jnp.float32),
            "var": 1.0 + 0.1 * jnp.abs(jax.random.normal(k5, (out_features,), jnp.float32)),
        })
    key, k1, k2, k3, k4, k5 = jax.random.split(key, 6)
    cin = features + len(sizes) * out_features
    params["bottleneck"] = {
        # PyTorch OIHW layout, channel order = [stage1..stage4, feats]
        "w": 0.05 * jax.random.normal(k1, (out_features, cin, 3, 3), jnp.float32),
        "gamma": 1.0 + 0.1 * jax.random.normal(k2, (out_features,), jnp.float32),
        "beta": 0.1 * jax.random.normal(k3, (out_features,), jnp.float32),
        "mean": 0.1 * jax.random.normal(k4, (out_features,), jnp.float32),
        "var": 1.0 + 0.1 * jnp.abs(jax.random.normal(k5, (out_features,), jnp.float32)),
    }
    return params


def ppm_forward(feats_nchw, params, sizes=(1, 2, 3, 6)):
    N, C, H, W = feats_nchw.shape
    outf = params["stages"][0]["w"].shape[1]
    feats_nhwc = jnp.transpose(feats_nchw, (0, 2, 3, 1))

    # ---- all four pyramid stages fused into ONE 1x1-conv matmul launch ------
    rows, offsets, off = [], [], 0
    for s in sizes:
        Ph = adaptive_pool_matrix(H, s)
        Pw = adaptive_pool_matrix(W, s)
        pooled = jnp.einsum("sh,nchw,tw->nstc", Ph, feats_nchw, Pw,
                            precision=lax.Precision.HIGHEST)      # (N,s,s,C)
        rows.append(pooled.reshape(N * s * s, C))
        offsets.append((off, off + N * s * s))
        off += N * s * s
    x_all = jnp.concatenate(rows, axis=0)                          # (M, C)
    m = x_all.shape[0]
    mp = _round_up(m, 8)

    wcols, bcols = [], []
    for p in params["stages"]:
        scale, bias = fold_bn(p["gamma"], p["beta"], p["mean"], p["var"])
        wcols.append(p["w"] * scale[None, :])                      # BN scale folded
        bcols.append(bias)
    w_all = jnp.concatenate(wcols, axis=1)                         # (C, 4*OutF)
    b_all = jnp.concatenate(bcols, axis=0)                         # (4*OutF,)

    kp = _round_up(C, LANE)
    ntot = len(sizes) * outf
    np_cols = _round_up(ntot, LANE)
    x_all = jnp.pad(x_all, ((0, mp - m), (0, kp - C))).astype(jnp.bfloat16)
    w_all = jnp.pad(w_all, ((0, kp - C), (0, np_cols - ntot))).astype(jnp.bfloat16)
    b_all = jnp.pad(b_all, (0, np_cols - ntot)).reshape(1, -1).astype(jnp.float32)

    y_all = matmul_bias_relu(x_all, w_all, b_all)                  # (Mp, np_cols) bf16

    # ---- bilinear upsample (align_corners=True) each stage, concat (bf16) ---
    stage_outs = []
    for idx, s in enumerate(sizes):
        lo, hi = offsets[idx]
        y = y_all[lo:hi, idx * outf:(idx + 1) * outf].reshape(N, s, s, outf)
        Ah = bilinear_up_matrix(H, s)
        Aw = bilinear_up_matrix(W, s)
        up = jnp.einsum("hs,nstc,wt->nhwc", Ah, y, Aw,
                        precision=lax.Precision.HIGHEST)
        stage_outs.append(up.astype(jnp.bfloat16))
    cat = jnp.concatenate(stage_outs + [feats_nhwc.astype(jnp.bfloat16)],
                          axis=-1)                                 # (N,H,W,C+4*OutF) bf16

    # ---- bottleneck 3x3 conv + folded BN + ReLU ------------------------------
    b = params["bottleneck"]
    scale, bias = fold_bn(b["gamma"], b["beta"], b["mean"], b["var"])
    w_hwio = jnp.transpose(b["w"], (2, 3, 1, 0)) * scale[None, None, None, :]
    out_nhwc = conv3x3_bias_relu(cat, w_hwio, bias)[..., :outf]
    # TODO(synk): Dropout2d(0.1) is identity at inference; train-mode stochastic
    # channel dropout (and batch-stat BatchNorm) are not implemented.
    return jnp.transpose(out_nhwc, (0, 3, 1, 2)).astype(jnp.float32)  # back to NCHW


def ppm_forward_ref(feats_nchw, params, sizes=(1, 2, 3, 6)):
    """Pure-JAX reference with the same bf16 rounding points as the kernel path."""
    N, C, H, W = feats_nchw.shape
    outf = params["stages"][0]["w"].shape[1]
    feats_nhwc = jnp.transpose(feats_nchw, (0, 2, 3, 1))
    outs = []
    for idx, s in enumerate(sizes):
        Ph = adaptive_pool_matrix(H, s)
        Pw = adaptive_pool_matrix(W, s)
        pooled = jnp.einsum("sh,nchw,tw->nstc", Ph, feats_nchw, Pw,
                            precision=lax.Precision.HIGHEST)
        p = params["stages"][idx]
        scale, bias = fold_bn(p["gamma"], p["beta"], p["mean"], p["var"])
        wf = _bf16(p["w"] * scale[None, :])
        x2 = _bf16(pooled.reshape(N * s * s, C))
        y = jnp.maximum(jnp.dot(x2, wf, precision=lax.Precision.HIGHEST)
                        + bias[None, :], 0.0)
        y = _bf16(y).reshape(N, s, s, outf)       # kernel emits the stage matmul in bf16
        Ah = bilinear_up_matrix(H, s)
        Aw = bilinear_up_matrix(W, s)
        up = jnp.einsum("hs,nstc,wt->nhwc", Ah, y, Aw,
                        precision=lax.Precision.HIGHEST)
        outs.append(_bf16(up))                    # concat happens in bf16
    cat = jnp.concatenate(outs + [_bf16(feats_nhwc)], axis=-1)
    b = params["bottleneck"]
    scale, bias = fold_bn(b["gamma"], b["beta"], b["mean"], b["var"])
    w_hwio = jnp.transpose(b["w"], (2, 3, 1, 0)) * scale[None, None, None, :]
    out = lax.conv_general_dilated(cat, _bf16(w_hwio), (1, 1),
                                   ((1, 1), (1, 1)),
                                   dimension_numbers=("NHWC", "HWIO", "NHWC"),
                                   precision=lax.Precision.HIGHEST)
    out = jnp.maximum(out + bias[None, None, None, :], 0.0)
    out = _bf16(out)                              # kernel emits the conv in bf16
    return jnp.transpose(out, (0, 3, 1, 2))


# ------------------------------------------------------------------ main

if __name__ == "__main__":
    N, C, H, W = 2, 4, 16, 16
    OUT_FEATURES = 8
    SIZES = (1, 2, 3, 6)

    key = jax.random.PRNGKey(0)
    kx, kp, kc1, kc2, kc3, kc4, kc5, kc6 = jax.random.split(key, 8)

    feats = jax.random.normal(kx, (N, C, H, W), jnp.float32)
    params = init_params(kp, C, OUT_FEATURES, SIZES)

    out = jax.block_until_ready(ppm_forward(feats, params, SIZES))
    assert out.shape == (N, OUT_FEATURES, H, W), out.shape
    assert bool(jnp.all(jnp.isfinite(out)))

    # --- full-module check against a pure-JAX reference (bf16 outputs => allow
    #     a couple of bf16 ulps of accumulation-order / quantization skew) ------
    ref = jax.block_until_ready(ppm_forward_ref(feats, params, SIZES))
    assert bool(jnp.allclose(out, ref, atol=3e-2, rtol=3e-2)), \
        float(jnp.max(jnp.abs(out - ref)))

    # --- standalone conv-kernel checks ----------------------------------------
    def conv_ref(xt, wt, bt):
        r = lax.conv_general_dilated(_bf16(xt), _bf16(wt), (1, 1), ((1, 1), (1, 1)),
                                     dimension_numbers=("NHWC", "HWIO", "NHWC"),
                                     precision=lax.Precision.HIGHEST)
        return _bf16(jnp.maximum(r + bt[None, None, None, :], 0.0))

    # (a) cin=512 -> TCIN=256 with two Cin-reduction steps; H=24 -> tr=8, 3 row tiles.
    cin_a, cout_a = 512, 8
    xa = jax.random.normal(kc1, (1, 24, W, cin_a), jnp.float32)
    wa = 0.05 * jax.random.normal(kc2, (3, 3, cin_a, cout_a), jnp.float32)
    ba = 0.1 * jax.random.normal(kc3, (cout_a,), jnp.float32)
    got_a = conv3x3_bias_relu(xa, wa, ba)[..., :cout_a].astype(jnp.float32)
    ref_a = conv_ref(xa, wa, ba)
    assert got_a.shape == ref_a.shape, (got_a.shape, ref_a.shape)
    assert bool(jnp.allclose(got_a, ref_a, atol=1.5e-2, rtol=1.5e-2)), \
        float(jnp.max(jnp.abs(got_a - ref_a)))

    # (b) cin=384 -> TCIN=128 with three Cin-reduction steps; H=13 -> padded to 16
    #     rows (tr=16) and sliced back.
    cin_b, cout_b = 384, 8
    xb = jax.random.normal(kc4, (1, 13, W, cin_b), jnp.float32)
    wb = 0.05 * jax.random.normal(kc5, (3, 3, cin_b, cout_b), jnp.float32)
    bb = 0.1 * jax.random.normal(kc6, (cout_b,), jnp.float32)
    got_b = conv3x3_bias_relu(xb, wb, bb)[..., :cout_b].astype(jnp.float32)
    ref_b = conv_ref(xb, wb, bb)
    assert got_b.shape == ref_b.shape, (got_b.shape, ref_b.shape)
    assert bool(jnp.allclose(got_b, ref_b, atol=1.5e-2, rtol=1.5e-2)), \
        float(jnp.max(jnp.abs(got_b - ref_b)))

    print("KERNEL_OK")
</pallas_src>

<mosaic_0001>
module attributes {stable_mosaic.version = 11 : i64} {
  func.func @_matmul_bias_relu_kernel(%arg0: memref<104x128xbf16, #tpu.memory_space<vmem>>, %arg1: memref<128x128xbf16, #tpu.memory_space<vmem>>, %arg2: memref<1x128xf32, #tpu.memory_space<vmem>>, %arg3: memref<104x128xbf16, #tpu.memory_space<vmem>>) attributes {dimension_semantics = [], scalar_prefetch = 0 : i64, scratch_operands = 0 : i64, tpu.core_type = #tpu.core_type<tc>} {
    %c0 = arith.constant 0 : index
    %c0_0 = arith.constant 0 : index
    %0 = vector.load %arg0[%c0, %c0_0] : memref<104x128xbf16, #tpu.memory_space<vmem>>, vector<104x128xbf16>
    %c0_1 = arith.constant 0 : index
    %c0_2 = arith.constant 0 : index
    %1 = vector.load %arg1[%c0_1, %c0_2] : memref<128x128xbf16, #tpu.memory_space<vmem>>, vector<128x128xbf16>
    %cst = arith.constant dense<0.000000e+00> : vector<104x128xf32>
    %2 = tpu.matmul %0, %1, %cst {dimension_numbers = #tpu.dot_dimension_numbers<[1], [0], [0], [1], [0, 0, 1, 1], [], []>} : vector<104x128xbf16>, vector<128x128xbf16>, vector<104x128xf32> -> vector<104x128xf32>
    %c0_3 = arith.constant 0 : index
    %c0_4 = arith.constant 0 : index
    %3 = vector.load %arg2[%c0_3, %c0_4] : memref<1x128xf32, #tpu.memory_space<vmem>>, vector<1x128xf32>
    %4 = vector.broadcast %3 : vector<1x128xf32> to vector<104x128xf32>
    %5 = arith.addf %2, %4 : vector<104x128xf32>
    %cst_5 = arith.constant 0.000000e+00 : f32
    %6 = vector.broadcast %cst_5 : f32 to vector<104x128xf32>
    %7 = arith.maximumf %5, %6 : vector<104x128xf32>
    %8 = arith.truncf %7 : vector<104x128xf32> to vector<104x128xbf16>
    %c0_6 = arith.constant 0 : index
    %c0_7 = arith.constant 0 : index
    %9 = vector.load %arg3[%c0_6, %c0_7] : memref<104x128xbf16, #tpu.memory_space<vmem>>, vector<104x128xbf16>
    tpu.vector_store %arg3[%c0_6, %c0_7], %8 {strides = array<i32>} : memref<104x128xbf16, #tpu.memory_space<vmem>>, vector<104x128xbf16>,
    return
  }
}

</mosaic_0001>

<llo_original>
// kernel: tpu_custom_call.1
$region0: #{tpu_custom_call.1}
  #allocation0 [shape = 'u32[]', space=smem, size = 0x4, offset = 0x4, fixed_abs, tag = 'smem constant byte address 0x4 - core index']
  #allocation1 [shape = 'u32[144,128]{1,0:T(1,128)}', space=vmem, size = 0x12000, scoped, tag = 'internal scratch']
  %s0 = inlined_call_operand.hbm [shape: bf16[104,128], index: 0, kind: input, shape index: {}]
  %s1 = inlined_call_operand.hbm [shape: bf16[128,128], index: 1, kind: input, shape index: {}]
  %s2 = inlined_call_operand.vmem [shape: f32[1,128], index: 2, kind: input, shape index: {}]
  %s3 = inlined_call_operand.hbm [shape: bf16[104,128], index: 3, kind: output, shape index: {}]
  %s4 = sld [smem:[#allocation0]]
  $region30: #{tpu_custom_call.1} parent=0
    _
  %s6 = ssub.s32 1, %s4
  %s7 = scalar_select 0, %s6, %s4
  $region1: #{tpu_custom_call.1} parent=0
    #allocation2 [shape = 'u8[26624]{0}', space=vmem, size = 0x6800, scoped, tag = 'input window, operand 0, single buffered']
    #allocation3 [shape = 's32[1]{0}', space=sflag, size = 0x4, scoped, tag = 'scoped memory for tpu_custom_call.1']
    #allocation4 [shape = 's32[1]{0}', space=sflag, size = 0x4, scoped, tag = 'scoped memory for tpu_custom_call.1']
    #allocation5 [shape = 'u8[32768]{0}', space=vmem, size = 0x8000, scoped, tag = 'input window, operand 1, single buffered']
    #allocation6 [shape = 's32[1]{0}', space=sflag, size = 0x4, scoped, tag = 'scoped memory for tpu_custom_call.1']
    #allocation7 [shape = 'u8[26624]{0}', space=vmem, size = 0x6800, scoped, tag = 'output window, operand 0, single buffered']
    %8 = vsyncpa [#allocation3], 0
    %9 = vsyncpa [#allocation6], 0
    %10 = vsyncpa [#allocation4], 0
    // Predicated region
    $region2: #{tpu_custom_call.1} parent=1 // pred_check
      _
    $region3: #{tpu_custom_call.1} parent=1 // pred_check_branch
      %12 = sbr.rel (0) target = $region5
    $region4: #{tpu_custom_call.1} parent=1 // pred_region
      %s14 = ssub.s32 832, 832
      %15 = vsyncadd [#allocation3], %s14
      %s16 = sshll.u32 [#allocation2], 4
      %s17 = int_to_ptr.vmem [resolvable:$true] %s16
      %22 = dma.hbm_to_vmem [thread:$0]  %s0, 832, %s17, [#allocation3], 64, 64, 4
    $region5: #{tpu_custom_call.1} parent=1 // pred_fallthru
      _
    // Predicated region
    $region6: #{tpu_custom_call.1} parent=1 // pred_check
      _
    $region7: #{tpu_custom_call.1} parent=1 // pred_check_branch
      %24 = sbr.rel (0) target = $region9
    $region8: #{tpu_custom_call.1} parent=1 // pred_region
      %s26 = ssub.s32 1024, 1024
      %27 = vsyncadd [#allocation6], %s26
      %s28 = sshll.u32 [#allocation5], 4
      %s29 = int_to_ptr.vmem [resolvable:$true] %s28
      %34 = dma.hbm_to_vmem [thread:$0]  %s1, 1024, %s29, [#allocation6], 64, 64, 4
    $region9: #{tpu_custom_call.1} parent=1 // pred_fallthru
      _
    // Predicated region
    $region10: #{tpu_custom_call.1} parent=1 // pred_check
      _
    $region11: #{tpu_custom_call.1} parent=1 // pred_check_branch
      %36 = sbr.rel (0) target = $region13
    $region12: #{tpu_custom_call.1} parent=1 // pred_region
      _
    $region13: #{tpu_custom_call.1} parent=1 // pred_fallthru
      _
    // Predicated region
    $region14: #{tpu_custom_call.1} parent=1 // pred_check
      _
    $region15: #{tpu_custom_call.1} parent=1 // pred_check_branch
      %38 = sbr.rel (0) target = $region17
    $region16: #{tpu_custom_call.1} parent=1 // pred_region
      %39 = dma.done [#allocation3], 832
    $region17: #{tpu_custom_call.1} parent=1 // pred_fallthru
      _
    // Predicated region
    $region18: #{tpu_custom_call.1} parent=1 // pred_check
      _
    $region19: #{tpu_custom_call.1} parent=1 // pred_check_branch
      %41 = sbr.rel (0) target = $region21
    $region20: #{tpu_custom_call.1} parent=1 // pred_region
      %42 = dma.done [#allocation6], 1024
    $region21: #{tpu_custom_call.1} parent=1 // pred_fallthru
      _
    %v44 = vld [vmem:[#allocation2] sm:$0xf]
    %v45 = vld [vmem:[#allocation2 + $0x4] sm:$0xf]
    %v46 = vld [vmem:[#allocation2 + $0x8] sm:$0xf]
    %v47 = vld [vmem:[#allocation2 + $0xc] sm:$0xf]
    %v48 = vld [vmem:[#allocation2 + $0x10] sm:$0xf]
    %v49 = vld [vmem:[#allocation2 + $0x14] sm:$0xf]
    %v50 = vld [vmem:[#allocation2 + $0x18] sm:$0xf]
    %v51 = vld [vmem:[#allocation2 + $0x1c] sm:$0xf]
    %v52 = vld [vmem:[#allocation2 + $0x20] sm:$0xf]
    %v53 = vld [vmem:[#allocation2 + $0x24] sm:$0xf]
    %v54 = vld [vmem:[#allocation2 + $0x28] sm:$0xf]
    %v55 = vld [vmem:[#allocation2 + $0x2c] sm:$0xf]
    %v56 = vld [vmem:[#allocation2 + $0x30] sm:$0xf]
    %v57 = vld [vmem:[#allocation5] sm:$0xf]
    %v58 = vld [vmem:[#allocation5 + $0x4] sm:$0xf]
    %v59 = vld [vmem:[#allocation5 + $0x8] sm:$0xf]
    %v60 = vld [vmem:[#allocation5 + $0xc] sm:$0xf]
    %v61 = vld [vmem:[#allocation5 + $0x10] sm:$0xf]
    %v62 = vld [vmem:[#allocation5 + $0x14] sm:$0xf]
    %v63 = vld [vmem:[#allocation5 + $0x18] sm:$0xf]
    %v64 = vld [vmem:[#allocation5 + $0x1c] sm:$0xf]
    %v65 = vld [vmem:[#allocation5 + $0x20] sm:$0xf]
    %v66 = vld [vmem:[#allocation5 + $0x24] sm:$0xf]
    %v67 = vld [vmem:[#allocation5 + $0x28] sm:$0xf]
    %v68 = vld [vmem:[#allocation5 + $0x2c] sm:$0xf]
    %v69 = vld [vmem:[#allocation5 + $0x30] sm:$0xf]
    %v70 = vld [vmem:[#allocation5 + $0x34] sm:$0xf]
    %v71 = vld [vmem:[#allocation5 + $0x38] sm:$0xf]
    %v72 = vld [vmem:[#allocation5 + $0x3c] sm:$0xf]
    %v73 = vld [vmem:[%s2] sm:$0x1]
    %v75 = vlaneseq
    %v76 = vshrl.u32 %v75, 7
    %v77 = vsub.s32 0, %v76
    %v78 = vrot.slane %v73, %v77
    %v93 = vunpack.c.l.b16 %v44
    %v94 = vunpack.c.l.b16 %v45
    %v95 = vunpack.c.l.b16 %v46
    %v96 = vunpack.c.l.b16 %v47
    %v97 = vunpack.c.l.b16 %v48
    %v98 = vunpack.c.l.b16 %v49
    %v99 = vunpack.c.l.b16 %v50
    %v100 = vunpack.c.l.b16 %v51
    %v101 = vunpack.c.l.b16 %v52
    %v102 = vunpack.c.l.b16 %v53
    %v103 = vunpack.c.l.b16 %v54
    %v104 = vunpack.c.l.b16 %v55
    %v105 = vunpack.c.l.b16 %v56
    %v106 = vpack.c.b16 %v94, %v93
    %v107 = vpack.c.b16 %v96, %v95
    %v108 = vpack.c.b16 %v98, %v97
    %v109 = vpack.c.b16 %v100, %v99
    %v110 = vpack.c.b16 %v102, %v101
    %v111 = vpack.c.b16 %v104, %v103
    %v112 = vpack.c.b16 %v105, %v105
    %v136 = vunpack.c.l.b16 %v57
    %v137 = vunpack.c.l.b16 %v58
    %v138 = vunpack.c.l.b16 %v59
    %v139 = vunpack.c.l.b16 %v60
    %v140 = vunpack.c.l.b16 %v61
    %v141 = vunpack.c.l.b16 %v62
    %v142 = vunpack.c.l.b16 %v63
    %v143 = vunpack.c.l.b16 %v64
    %v144 = vunpack.c.l.b16 %v65
    %v145 = vunpack.c.l.b16 %v66
    %v146 = vunpack.c.l.b16 %v67
    %v147 = vunpack.c.l.b16 %v68
    %v148 = vunpack.c.l.b16 %v69
    %v149 = vunpack.c.l.b16 %v70
    %v150 = vunpack.c.l.b16 %v71
    %v151 = vunpack.c.l.b16 %v72
    %v152 = vpack.c.b16 %v137, %v136
    %v153 = vpack.c.b16 %v139, %v138
    %v154 = vpack.c.b16 %v141, %v140
    %v155 = vpack.c.b16 %v143, %v142
    %v156 = vpack.c.b16 %v145, %v144
    %v157 = vpack.c.b16 %v147, %v146
    %v158 = vpack.c.b16 %v149, %v148
    %v159 = vpack.c.b16 %v151, %v150
    %168 = vmatprep.subr.bf16.mxu0 0
    %169 = vmatpush1.bf16.msra.mxu0 %v159
    %170 = vmatprep.subr.bf16.mxu0 0
    %171 = vmatpush1.bf16.msra.mxu0 %v158
    %172 = vmatprep.subr.bf16.mxu0 0
    %173 = vmatpush1.bf16.msra.mxu0 %v157
    %174 = vmatprep.subr.bf16.mxu0 0
    %175 = vmatpush1.bf16.msra.mxu0 %v156
    %176 = vmatprep.subr.bf16.mxu0 0
    %177 = vmatpush1.bf16.msra.mxu0 %v155
    %178 = vmatprep.subr.bf16.mxu0 0
    %179 = vmatpush1.bf16.msra.mxu0 %v154
    %180 = vmatprep.subr.bf16.mxu0 0
    %181 = vmatpush1.bf16.msra.mxu0 %v153
    %182 = vmatprep.subr.bf16.mxu0 0
    %183 = vmatpush1.bf16.msra.mxu0 %v152
    %184 = vmatprep.subr.bf16.mxu0 0
    %185 = vmatpush2.bf16.msra.mxu0 0
    %186 = vmatprep.subr.bf16.mxu0 0
    %187 = vmatpush2.bf16.msra.mxu0 0
    %188 = vmatprep.subr.bf16.mxu0 0
    %189 = vmatpush2.bf16.msra.mxu0 0
    %190 = vmatprep.subr.bf16.mxu0 0
    %191 = vmatpush2.bf16.msra.mxu0 0
    %192 = vmatprep.subr.bf16.mxu0 0
    %193 = vmatpush2.bf16.msra.mxu0 0
    %194 = vmatprep.subr.bf16.mxu0 0
    %195 = vmatpush2.bf16.msra.mxu0 0
    %196 = vmatprep.subr.bf16.mxu0 0
    %197 = vmatpush2.bf16.msra.mxu0 0
    %198 = vmatprep.subr.bf16.mxu0 0
    %199 = vmatpush2.bf16.msra.mxu0 0
    %200 = vmatprep.mubr.bf16.mxu0 0
    %201 = vmatmul.mubr.bf16.gmra.mxu0 %v106
    %v202 = vpop.f32.mrf.mxu0
    %v203 = vadd.f32 %v78, %v202
    %v204 = vpop.f32.mrf.mxu0
    %v205 = vpop.f32.mrf.mxu0
    %v206 = vadd.f32 %v78, %v205
    %v207 = vpop.f32.mrf.mxu0
    %208 = vmatprep.mubr.bf16.mxu0 0
    %209 = vmatmul.mubr.bf16.gmra.mxu0 %v107
    %v210 = vpop.f32.mrf.mxu0
    %v211 = vadd.f32 %v78, %v210
    %v212 = vpop.f32.mrf.mxu0
    %v213 = vpop.f32.mrf.mxu0
    %v214 = vadd.f32 %v78, %v213
    %v215 = vpop.f32.mrf.mxu0
    %216 = vmatprep.mubr.bf16.mxu0 0
    %217 = vmatmul.mubr.bf16.gmra.mxu0 %v108
    %v218 = vpop.f32.mrf.mxu0
    %v219 = vadd.f32 %v78, %v218
    %v220 = vpop.f32.mrf.mxu0
    %v221 = vpop.f32.mrf.mxu0
    %v222 = vadd.f32 %v78, %v221
    %v223 = vpop.f32.mrf.mxu0
    %224 = vmatprep.mubr.bf16.mxu0 0
    %225 = vmatmul.mubr.bf16.gmra.mxu0 %v109
    %v226 = vpop.f32.mrf.mxu0
    %v227 = vadd.f32 %v78, %v226
    %v228 = vpop.f32.mrf.mxu0
    %v229 = vpop.f32.mrf.mxu0
    %v230 = vadd.f32 %v78, %v229
    %v231 = vpop.f32.mrf.mxu0
    %232 = vmatprep.mubr.bf16.mxu0 0
    %233 = vmatmul.mubr.bf16.gmra.mxu0 %v110
    %v234 = vpop.f32.mrf.mxu0
    %v235 = vadd.f32 %v78, %v234
    %v236 = vpop.f32.mrf.mxu0
    %v237 = vpop.f32.mrf.mxu0
    %v238 = vadd.f32 %v78, %v237
    %v239 = vpop.f32.mrf.mxu0
    %240 = vmatprep.mubr.bf16.mxu0 0
    %241 = vmatmul.mubr.bf16.gmra.mxu0 %v111
    %v242 = vpop.f32.mrf.mxu0
    %v243 = vadd.f32 %v78, %v242
    %v244 = vpop.f32.mrf.mxu0
    %v245 = vpop.f32.mrf.mxu0
    %v246 = vadd.f32 %v78, %v245
    %v247 = vpop.f32.mrf.mxu0
    %248 = vmatprep.mubr.bf16.mxu0 0
    %249 = vmatmul.mubr.bf16.gmra.mxu0 %v112
    %v250 = vpop.f32.mrf.mxu0
    %v251 = vadd.f32 %v78, %v250
    %v252 = vpop.f32.mrf.mxu0
    %v253 = vpop.f32.mrf.mxu0
    %v254 = vpop.f32.mrf.mxu0
    %255 = vdwg.mxu0
    %v256 = vmax.f32 %v203, 0.0
    %v257 = vmax.f32 %v206, 0.0
    %v258 = vmax.f32 %v211, 0.0
    %v259 = vmax.f32 %v214, 0.0
    %v260 = vmax.f32 %v219, 0.0
    %v261 = vmax.f32 %v222, 0.0
    %v262 = vmax.f32 %v227, 0.0
    %v263 = vmax.f32 %v230, 0.0
    %v264 = vmax.f32 %v235, 0.0
    %v265 = vmax.f32 %v238, 0.0
    %v266 = vmax.f32 %v243, 0.0
    %v267 = vmax.f32 %v246, 0.0
    %v268 = vmax.f32 %v251, 0.0
    %v269 = vpack.c.bf16 %v257, %v256
    %v270 = vpack.c.bf16 %v259, %v258
    %v271 = vpack.c.bf16 %v261, %v260
    %v272 = vpack.c.bf16 %v263, %v262
    %v273 = vpack.c.bf16 %v265, %v264
    %v274 = vpack.c.bf16 %v267, %v266
    %v275 = vpack.c.bf16 %v268, %v268
    %v283 = vunpack.c.l.b16 %v269
    %v284 = vunpack.c.h.b16 %v269
    %v285 = vunpack.c.l.b16 %v270
    %v286 = vunpack.c.h.b16 %v270
    %v287 = vunpack.c.l.b16 %v271
    %v288 = vunpack.c.h.b16 %v271
    %v289 = vunpack.c.l.b16 %v272
    %v290 = vunpack.c.h.b16 %v272
    %v291 = vunpack.c.l.b16 %v273
    %v292 = vunpack.c.h.b16 %v273
    %v293 = vunpack.c.l.b16 %v274
    %v294 = vunpack.c.h.b16 %v274
    %v295 = vunpack.c.l.b16 %v275
    %v296 = vpack.c.b16 %v283, %v283
    %v297 = vpack.c.b16 %v284, %v284
    %v298 = vpack.c.b16 %v285, %v285
    %v299 = vpack.c.b16 %v286, %v286
    %v300 = vpack.c.b16 %v287, %v287
    %v301 = vpack.c.b16 %v288, %v288
    %v302 = vpack.c.b16 %v289, %v289
    %v303 = vpack.c.b16 %v290, %v290
    %v304 = vpack.c.b16 %v291, %v291
    %v305 = vpack.c.b16 %v292, %v292
    %v306 = vpack.c.b16 %v293, %v293
    %v307 = vpack.c.b16 %v294, %v294
    %v308 = vpack.c.b16 %v295, %v295
    %322 = vst [vmem:[#allocation7] sm:$0xf] %v296
    %323 = vst [vmem:[#allocation7 + $0x4] sm:$0xf] %v297
    %324 = vst [vmem:[#allocation7 + $0x8] sm:$0xf] %v298
    %325 = vst [vmem:[#allocation7 + $0xc] sm:$0xf] %v299
    %326 = vst [vmem:[#allocation7 + $0x10] sm:$0xf] %v300
    %327 = vst [vmem:[#allocation7 + $0x14] sm:$0xf] %v301
    %328 = vst [vmem:[#allocation7 + $0x18] sm:$0xf] %v302
    %329 = vst [vmem:[#allocation7 + $0x1c] sm:$0xf] %v303
    %330 = vst [vmem:[#allocation7 + $0x20] sm:$0xf] %v304
    %331 = vst [vmem:[#allocation7 + $0x24] sm:$0xf] %v305
    %332 = vst [vmem:[#allocation7 + $0x28] sm:$0xf] %v306
    %333 = vst [vmem:[#allocation7 + $0x2c] sm:$0xf] %v307
    %334 = vst [vmem:[#allocation7 + $0x30] sm:$0xf] %v308
    // Predicated region
    $region22: #{tpu_custom_call.1} parent=1 // pred_check
      _
    $region23: #{tpu_custom_call.1} parent=1 // pred_check_branch
      %336 = sbr.rel (0) target = $region25
    $region24: #{tpu_custom_call.1} parent=1 // pred_region
      %s338 = ssub.s32 832, 832
      %339 = vsyncadd [#allocation4], %s338
      %s340 = sshll.u32 [#allocation7], 4
      %s341 = int_to_ptr.vmem [resolvable:$true] %s340
      %346 = dma.vmem_to_hbm [thread:$0]  %s341, 832, %s3, [#allocation4], 64, 64, 4
    $region25: #{tpu_custom_call.1} parent=1 // pred_fallthru
      _
    // Predicated region
    $region26: #{tpu_custom_call.1} parent=1 // pred_check
      _
    $region27: #{tpu_custom_call.1} parent=1 // pred_check_branch
      %348 = sbr.rel (0) target = $region29
    $region28: #{tpu_custom_call.1} parent=1 // pred_region
      %349 = dma.done [#allocation4], 832
    $region29: #{tpu_custom_call.1} parent=1 // pred_fallthru
      _
    %350 = vsyncpa [#allocation3], 1
    %351 = vsyncpa [#allocation6], 1
    %352 = vsyncpa [#allocation4], 1

</llo_original>
